<compile_context>
chip_gen: v7x
topology: tpu7x:2x2x1
jax: 0.10.0
libtpu: 0.0.40
codegen_flags: <defaults>
</compile_context>

<pallas_src>
import functools

import jax
import jax.numpy as jnp
from jax.experimental import pallas as pl
from jax.experimental.pallas import tpu as pltpu


def _round_up(x: int, m: int) -> int:
    return (x + m - 1) // m * m


def _pick_tile_n(n_pad: int) -> int:
    # n_pad is always a multiple of 128; pick the largest "nice" tile that
    # divides it.  Kept modest (<=512) so a double-buffered weight tile fits
    # comfortably in v5e's 16 MiB / v7x's 32 MiB scoped VMEM at large hdim.
    for tn in (512, 256, 128):
        if n_pad % tn == 0:
            return tn
    return 128


def _make_kernel(apply_bn: bool, true_b: int, eps: float):
    if apply_bn:
        def kernel(x_ref, w_ref, bias_ref, gamma_ref, beta_ref, out_ref):
            # Single fused GEMM (MXU) + bias.
            h = (jnp.dot(x_ref[...], w_ref[...],
                         preferred_element_type=jnp.float32)
                 + bias_ref[...])
            # Batch statistics over the *true* batch rows only (padding rows
            # are masked out).  Biased variance, eps inside rsqrt -> matches
            # PyTorch BatchNorm1d training-mode forward.
            row_ids = jax.lax.broadcasted_iota(jnp.int32, h.shape, 0)
            row_mask = row_ids < true_b
            inv_b = 1.0 / float(true_b)
            hm = jnp.where(row_mask, h, 0.0)
            mean = jnp.sum(hm, axis=0, keepdims=True) * inv_b
            d = jnp.where(row_mask, h - mean, 0.0)
            var = jnp.sum(d * d, axis=0, keepdims=True) * inv_b
            # Fused affine: one broadcasted multiply-add per element.
            scale = gamma_ref[...] * jax.lax.rsqrt(var + eps)
            shift = beta_ref[...] - mean * scale
            out_ref[...] = jnp.maximum(h * scale + shift, 0.0).astype(out_ref.dtype)
    else:
        def kernel(x_ref, w_ref, bias_ref, out_ref):
            h = (jnp.dot(x_ref[...], w_ref[...],
                         preferred_element_type=jnp.float32)
                 + bias_ref[...])
            out_ref[...] = jnp.maximum(h, 0.0).astype(out_ref.dtype)
    return kernel


@functools.partial(jax.jit, static_argnames=("eps", "compute_dtype"))
def path_encoder_forward(src, tgt, ws, bs, wt, bt, gamma, beta,
                         *, eps=1e-5, compute_dtype=jnp.float32):
    """src: [B, hdim], tgt: [B, path_dim] -> [B, hdim] (float32).

    ws: [hdim, hdim], wt: [path_dim, hdim] (transposed vs PyTorch),
    bs/bt/gamma/beta: [1, hdim] or [hdim].
    compute_dtype: dtype of the GEMM inputs (use jnp.bfloat16 on v6e/v7x for
    ~2x MXU throughput; accumulation stays f32).
    """
    B, hdim = src.shape
    _, path_dim = tgt.shape
    apply_bn = B > 1  # static (shape-dependent) branch, same as the PyTorch module

    cdt = jnp.dtype(compute_dtype)

    # ---- Fuse the two GEMMs + pad to (8, 128)-friendly shapes --------------
    K = hdim + path_dim
    B_pad = _round_up(max(B, 1), 8)
    K_pad = _round_up(K, 128)
    N_pad = _round_up(hdim, 128)

    x = jnp.zeros((B_pad, K_pad), cdt)
    x = x.at[:B, :hdim].set(src.astype(cdt))
    x = x.at[:B, hdim:K].set(tgt.astype(cdt))

    w = jnp.zeros((K_pad, N_pad), cdt)
    w = w.at[:hdim, :hdim].set(ws.astype(cdt))
    w = w.at[hdim:K, :hdim].set(wt.astype(cdt))

    bias = jnp.zeros((1, N_pad), jnp.float32)
    bias = bias.at[:, :hdim].set((bs.astype(jnp.float32)
                                  + bt.astype(jnp.float32)).reshape(1, hdim))

    tn = _pick_tile_n(N_pad)
    grid = (N_pad // tn,)

    in_specs = [
        pl.BlockSpec((B_pad, K_pad), lambda j: (0, 0)),  # x: resident across grid
        pl.BlockSpec((K_pad, tn), lambda j: (0, j)),     # W column tile
        pl.BlockSpec((1, tn), lambda j: (0, j)),         # fused bias tile
    ]
    args = [x, w, bias]

    if apply_bn:
        g = jnp.ones((1, N_pad), jnp.float32)
        g = g.at[:, :hdim].set(gamma.astype(jnp.float32).reshape(1, hdim))
        be = jnp.zeros((1, N_pad), jnp.float32)
        be = be.at[:, :hdim].set(beta.astype(jnp.float32).reshape(1, hdim))
        in_specs += [pl.BlockSpec((1, tn), lambda j: (0, j)),
                     pl.BlockSpec((1, tn), lambda j: (0, j))]
        args += [g, be]

    kernel = _make_kernel(apply_bn, B, eps)

    # Rough double-buffered VMEM footprint; give headroom, cap below v7x's
    # 64 MiB physical per-TC VMEM.
    n_small = 3 if apply_bn else 1
    est = (2 * B_pad * K_pad * cdt.itemsize          # x
           + 2 * K_pad * tn * cdt.itemsize           # W tile
           + 2 * n_small * 8 * tn * 4                # bias/gamma/beta tiles
           + 2 * B_pad * tn * 4)                     # out tile
    vmem_limit = int(min(64 * 2**20, max(2 * est, 16 * 2**20)))

    out = pl.pallas_call(
        kernel,
        out_shape=jax.ShapeDtypeStruct((B_pad, N_pad), jnp.float32),
        grid=grid,
        in_specs=in_specs,
        out_specs=pl.BlockSpec((B_pad, tn), lambda j: (0, j)),
        compiler_params=pltpu.CompilerParams(
            dimension_semantics=("parallel",),
            vmem_limit_bytes=vmem_limit,
        ),
    )(*args)

    return out[:B, :hdim]


def xavier_uniform(key, fan_in, fan_out):
    # matches nn.init.xavier_uniform_ for a [fan_out, fan_in] weight; stored [fan_in, fan_out]
    limit = (6.0 / (fan_in + fan_out)) ** 0.5
    return jax.random.uniform(key, (fan_in, fan_out), jnp.float32, -limit, limit)


def _reference(src, tgt, ws, bs, wt, bt, gamma, beta, eps=1e-5):
    h = src @ ws + bs + tgt @ wt + bt
    if src.shape[0] > 1:
        m = h.mean(axis=0, keepdims=True)
        v = ((h - m) ** 2).mean(axis=0, keepdims=True)
        h = (h - m) / jnp.sqrt(v + eps) * gamma + beta
    return jnp.maximum(h, 0.0)


if __name__ == "__main__":
    B, hdim, path_dim = 2, 32, 16

    key = jax.random.PRNGKey(0)
    k_src, k_tgt, k_ws, k_wt, k_bs, k_bt = jax.random.split(key, 6)

    # Inputs
    src = jax.random.normal(k_src, (B, hdim), jnp.float32)
    tgt = jax.random.normal(k_tgt, (B, path_dim), jnp.float32)

    # Parameters (deterministic, synthetic)
    ws = xavier_uniform(k_ws, hdim, hdim)          # src_weights.weight^T : [hdim, hdim]
    wt = xavier_uniform(k_wt, path_dim, hdim)      # tgt_weights.weight^T : [path_dim, hdim]
    bs = jax.random.uniform(k_bs, (1, hdim), jnp.float32,
                            -1.0 / hdim ** 0.5, 1.0 / hdim ** 0.5)
    bt = jax.random.uniform(k_bt, (1, hdim), jnp.float32,
                            -1.0 / path_dim ** 0.5, 1.0 / path_dim ** 0.5)
    gamma = jnp.ones((1, hdim), jnp.float32)       # BatchNorm1d.weight
    beta = jnp.zeros((1, hdim), jnp.float32)       # BatchNorm1d.bias

    # --- B > 1 path (BatchNorm + ReLU) ---
    out = path_encoder_forward(src, tgt, ws, bs, wt, bt, gamma, beta)
    jax.block_until_ready(out)
    ref = _reference(src, tgt, ws, bs, wt, bt, gamma, beta)
    assert out.shape == (B, hdim)
    assert jnp.allclose(out, ref, atol=1e-4, rtol=1e-4), "mismatch vs reference (B>1)"

    # --- B == 1 path (no BatchNorm) ---
    out1 = path_encoder_forward(src[:1], tgt[:1], ws, bs, wt, bt, gamma, beta)
    jax.block_until_ready(out1)
    ref1 = _reference(src[:1], tgt[:1], ws, bs, wt, bt, gamma, beta)
    assert out1.shape == (1, hdim)
    assert jnp.allclose(out1, ref1, atol=1e-4, rtol=1e-4), "mismatch vs reference (B==1)"

    # TODO(synk): BatchNorm1d running_mean/running_var are not updated (forward-only).
    print("KERNEL_OK")
</pallas_src>

<mosaic_0001>
module attributes {stable_mosaic.version = 11 : i64} {
  func.func @kernel(%arg0: i32, %arg1: memref<8x128xf32, #tpu.memory_space<vmem>>, %arg2: memref<128x128xf32, #tpu.memory_space<vmem>>, %arg3: memref<1x128xf32, #tpu.memory_space<vmem>>, %arg4: memref<1x128xf32, #tpu.memory_space<vmem>>, %arg5: memref<1x128xf32, #tpu.memory_space<vmem>>, %arg6: memref<8x128xf32, #tpu.memory_space<vmem>>) attributes {dimension_semantics = [#tpu.dimension_semantics<parallel>], iteration_bounds = array<i64: 1>, scalar_prefetch = 0 : i64, scratch_operands = 0 : i64, tpu.core_type = #tpu.core_type<tc>, window_params = [{pipeline_mode = #tpu.pipeline_mode<synchronous>, transform_indices = @transform_0, window_bounds = array<i64: 8, 128>}, {transform_indices = @transform_1, window_bounds = array<i64: 128, 128>}, {transform_indices = @transform_2, window_bounds = array<i64: 1, 128>}, {transform_indices = @transform_3, window_bounds = array<i64: 1, 128>}, {transform_indices = @transform_4, window_bounds = array<i64: 1, 128>}, {transform_indices = @transform_5, window_bounds = array<i64: 8, 128>}]} {
    %c0 = arith.constant 0 : index
    %c0_0 = arith.constant 0 : index
    %0 = vector.load %arg1[%c0, %c0_0] : memref<8x128xf32, #tpu.memory_space<vmem>>, vector<8x128xf32>
    %c0_1 = arith.constant 0 : index
    %c0_2 = arith.constant 0 : index
    %1 = vector.load %arg2[%c0_1, %c0_2] : memref<128x128xf32, #tpu.memory_space<vmem>>, vector<128x128xf32>
    %cst = arith.constant dense<0.000000e+00> : vector<8x128xf32>
    %2 = tpu.matmul %0, %1, %cst {dimension_numbers = #tpu.dot_dimension_numbers<[1], [0], [0], [1], [0, 0, 1, 1], [], []>} : vector<8x128xf32>, vector<128x128xf32>, vector<8x128xf32> -> vector<8x128xf32>
    %c0_3 = arith.constant 0 : index
    %c0_4 = arith.constant 0 : index
    %3 = vector.load %arg3[%c0_3, %c0_4] : memref<1x128xf32, #tpu.memory_space<vmem>>, vector<1x128xf32>
    %4 = vector.broadcast %3 : vector<1x128xf32> to vector<8x128xf32>
    %5 = arith.addf %2, %4 : vector<8x128xf32>
    %6 = tpu.iota {dimensions = array<i32: 0>} : vector<8x128xi32>
    %c2_i32 = arith.constant 2 : i32
    %7 = vector.broadcast %c2_i32 : i32 to vector<8x128xi32>
    %8 = arith.cmpi slt, %6, %7 : vector<8x128xi32>
    %cst_5 = arith.constant 0.000000e+00 : f32
    %9 = vector.broadcast %cst_5 : f32 to vector<8x128xf32>
    %10 = arith.select %8, %5, %9 : vector<8x128xi1>, vector<8x128xf32>
    %cst_6 = arith.constant dense<0.000000e+00> : vector<128xf32>
    %11 = vector.multi_reduction <add>, %10, %cst_6 [0] : vector<8x128xf32> to vector<128xf32>
    %12 = vector.shape_cast %11 : vector<128xf32> to vector<1x128xf32>
    %cst_7 = arith.constant 5.000000e-01 : f32
    %13 = vector.broadcast %cst_7 : f32 to vector<1x128xf32>
    %14 = arith.mulf %12, %13 : vector<1x128xf32>
    %15 = vector.broadcast %14 : vector<1x128xf32> to vector<8x128xf32>
    %16 = arith.subf %5, %15 : vector<8x128xf32>
    %cst_8 = arith.constant 0.000000e+00 : f32
    %17 = vector.broadcast %cst_8 : f32 to vector<8x128xf32>
    %18 = arith.select %8, %16, %17 : vector<8x128xi1>, vector<8x128xf32>
    %19 = arith.mulf %18, %18 : vector<8x128xf32>
    %cst_9 = arith.constant dense<0.000000e+00> : vector<128xf32>
    %20 = vector.multi_reduction <add>, %19, %cst_9 [0] : vector<8x128xf32> to vector<128xf32>
    %21 = vector.shape_cast %20 : vector<128xf32> to vector<1x128xf32>
    %cst_10 = arith.constant 5.000000e-01 : f32
    %22 = vector.broadcast %cst_10 : f32 to vector<1x128xf32>
    %23 = arith.mulf %21, %22 : vector<1x128xf32>
    %c0_11 = arith.constant 0 : index
    %c0_12 = arith.constant 0 : index
    %24 = vector.load %arg4[%c0_11, %c0_12] : memref<1x128xf32, #tpu.memory_space<vmem>>, vector<1x128xf32>
    %cst_13 = arith.constant 9.99999974E-6 : f32
    %25 = vector.broadcast %cst_13 : f32 to vector<1x128xf32>
    %26 = arith.addf %23, %25 : vector<1x128xf32>
    %27 = math.rsqrt %26 : vector<1x128xf32>
    %28 = arith.mulf %24, %27 : vector<1x128xf32>
    %c0_14 = arith.constant 0 : index
    %c0_15 = arith.constant 0 : index
    %29 = vector.load %arg5[%c0_14, %c0_15] : memref<1x128xf32, #tpu.memory_space<vmem>>, vector<1x128xf32>
    %30 = arith.mulf %14, %28 : vector<1x128xf32>
    %31 = arith.subf %29, %30 : vector<1x128xf32>
    %32 = vector.broadcast %28 : vector<1x128xf32> to vector<8x128xf32>
    %33 = arith.mulf %5, %32 : vector<8x128xf32>
    %34 = vector.broadcast %31 : vector<1x128xf32> to vector<8x128xf32>
    %35 = arith.addf %33, %34 : vector<8x128xf32>
    %cst_16 = arith.constant 0.000000e+00 : f32
    %36 = vector.broadcast %cst_16 : f32 to vector<8x128xf32>
    %37 = arith.maximumf %35, %36 : vector<8x128xf32>
    %c0_17 = arith.constant 0 : index
    %c0_18 = arith.constant 0 : index
    %38 = vector.load %arg6[%c0_17, %c0_18] : memref<8x128xf32, #tpu.memory_space<vmem>>, vector<8x128xf32>
    tpu.vector_store %arg6[%c0_17, %c0_18], %37 {strides = array<i32>} : memref<8x128xf32, #tpu.memory_space<vmem>>, vector<8x128xf32>,
    return
  }
  func.func @transform_0(%arg0: i32) -> (i32, i32) {
    %c0_i32 = arith.constant 0 : i32
    %c0_i32_0 = arith.constant 0 : i32
    %c0_i32_1 = arith.constant 0 : i32
    return %c0_i32, %c0_i32_0 : i32, i32
  }
  func.func @transform_1(%arg0: i32) -> (i32, i32) {
    %c0_i32 = arith.constant 0 : i32
    %c0_i32_0 = arith.constant 0 : i32
    return %c0_i32, %arg0 : i32, i32
  }
  func.func @transform_2(%arg0: i32) -> (i32, i32) {
    %c0_i32 = arith.constant 0 : i32
    %c0_i32_0 = arith.constant 0 : i32
    return %c0_i32, %arg0 : i32, i32
  }
  func.func @transform_3(%arg0: i32) -> (i32, i32) {
    %c0_i32 = arith.constant 0 : i32
    %c0_i32_0 = arith.constant 0 : i32
    return %c0_i32, %arg0 : i32, i32
  }
  func.func @transform_4(%arg0: i32) -> (i32, i32) {
    %c0_i32 = arith.constant 0 : i32
    %c0_i32_0 = arith.constant 0 : i32
    return %c0_i32, %arg0 : i32, i32
  }
  func.func @transform_5(%arg0: i32) -> (i32, i32) {
    %c0_i32 = arith.constant 0 : i32
    %c0_i32_0 = arith.constant 0 : i32
    return %c0_i32, %arg0 : i32, i32
  }
}

</mosaic_0001>

<llo_original>
// kernel: path_encoder_forward.1
$region0: #{path_encoder_forward.1}
  #allocation0 [shape = 'u32[]', space=smem, size = 0x4, offset = 0x4, fixed_abs, tag = 'smem constant byte address 0x4 - core index']
  #allocation1 [shape = 'u32[144,128]{1,0:T(1,128)}', space=vmem, size = 0x12000, scoped, tag = 'internal scratch']
  %s0 = inlined_call_operand.vmem [shape: f32[8,128], index: 0, kind: input, shape index: {}]
  %s1 = inlined_call_operand.vmem [shape: f32[128,128], index: 1, kind: input, shape index: {}]
  %s2 = inlined_call_operand.vmem [shape: f32[1,128], index: 2, kind: input, shape index: {}]
  %s3 = inlined_call_operand.vmem [shape: f32[1,128], index: 3, kind: input, shape index: {}]
  %s4 = inlined_call_operand.vmem [shape: f32[1,128], index: 4, kind: input, shape index: {}]
  %s5 = inlined_call_operand.vmem [shape: f32[8,128], index: 5, kind: output, shape index: {}]
  %s6 = sld [smem:[#allocation0]]
  $region30: #{path_encoder_forward.1} parent=0
    _
  %s8 = ssub.s32 1, %s6
  %s9 = scalar_select 0, %s8, %s6
  // Predicated region
  $region2: #{path_encoder_forward.1} parent=0 // pred_check
    _
  $region3: #{path_encoder_forward.1} parent=0 // pred_check_branch
    %11 = sbr.rel (0) target = $region5
  $region4: #{path_encoder_forward.1} parent=0 // pred_region
    _
  $region5: #{path_encoder_forward.1} parent=0 // pred_fallthru
    _
  // Predicated region
  $region6: #{path_encoder_forward.1} parent=0 // pred_check
    _
  $region7: #{path_encoder_forward.1} parent=0 // pred_check_branch
    %13 = sbr.rel (0) target = $region9
  $region8: #{path_encoder_forward.1} parent=0 // pred_region
    _
  $region9: #{path_encoder_forward.1} parent=0 // pred_fallthru
    _
  // Predicated region
  $region10: #{path_encoder_forward.1} parent=0 // pred_check
    _
  $region11: #{path_encoder_forward.1} parent=0 // pred_check_branch
    %15 = sbr.rel (0) target = $region13
  $region12: #{path_encoder_forward.1} parent=0 // pred_region
    _
  $region13: #{path_encoder_forward.1} parent=0 // pred_fallthru
    _
  // Predicated region
  $region14: #{path_encoder_forward.1} parent=0 // pred_check
    _
  $region15: #{path_encoder_forward.1} parent=0 // pred_check_branch
    %17 = sbr.rel (0) target = $region17
  $region16: #{path_encoder_forward.1} parent=0 // pred_region
    _
  $region17: #{path_encoder_forward.1} parent=0 // pred_fallthru
    _
  // Predicated region
  $region18: #{path_encoder_forward.1} parent=0 // pred_check
    _
  $region19: #{path_encoder_forward.1} parent=0 // pred_check_branch
    %19 = sbr.rel (0) target = $region21
  $region20: #{path_encoder_forward.1} parent=0 // pred_region
    _
  $region21: #{path_encoder_forward.1} parent=0 // pred_fallthru
    _
  %v20 = vld [vmem:[%s0] sm:$0xff]
  %v21 = vld [vmem:[%s1] sm:$0xff]
  %v22 = vld [vmem:[%s1 + $0x8] sm:$0xff]
  %v23 = vld [vmem:[%s1 + $0x10] sm:$0xff]
  %v24 = vld [vmem:[%s1 + $0x18] sm:$0xff]
  %v25 = vld [vmem:[%s1 + $0x20] sm:$0xff]
  %v26 = vld [vmem:[%s1 + $0x28] sm:$0xff]
  %v27 = vld [vmem:[%s1 + $0x30] sm:$0xff]
  %v28 = vld [vmem:[%s1 + $0x38] sm:$0xff]
  %v29 = vld [vmem:[%s1 + $0x40] sm:$0xff]
  %v30 = vld [vmem:[%s1 + $0x48] sm:$0xff]
  %v31 = vld [vmem:[%s1 + $0x50] sm:$0xff]
  %v32 = vld [vmem:[%s1 + $0x58] sm:$0xff]
  %v33 = vld [vmem:[%s1 + $0x60] sm:$0xff]
  %v34 = vld [vmem:[%s1 + $0x68] sm:$0xff]
  %v35 = vld [vmem:[%s1 + $0x70] sm:$0xff]
  %v36 = vld [vmem:[%s1 + $0x78] sm:$0xff]
  %v37 = vld [vmem:[%s2] sm:$0x1]
  %v39 = vlaneseq
  %v40 = vshrl.u32 %v39, 7
  %v41 = vsub.s32 0, %v40
  %v42 = vrot.slane %v37, %v41
  %44 = vmatprep.subr.mxu0 0.0
  %45 = vmatpush1.msra.mxu0 %v21
  %46 = vmatprep.subr.mxu0 0.0
  %47 = vmatpush1.msra.mxu0 %v22
  %48 = vmatprep.subr.mxu0 0.0
  %49 = vmatpush1.msra.mxu0 %v23
  %50 = vmatprep.subr.mxu0 0.0
  %51 = vmatpush1.msra.mxu0 %v24
  %52 = vmatprep.subr.mxu0 0.0
  %53 = vmatpush1.msra.mxu0 %v25
  %54 = vmatprep.subr.mxu0 0.0
  %55 = vmatpush1.msra.mxu0 %v26
  %56 = vmatprep.subr.mxu0 0.0
  %57 = vmatpush1.msra.mxu0 %v27
  %58 = vmatprep.subr.mxu0 0.0
  %59 = vmatpush1.msra.mxu0 %v28
  %60 = vmatprep.subr.mxu0 0.0
  %61 = vmatpush1.msra.mxu0 %v29
  %62 = vmatprep.subr.mxu0 0.0
  %63 = vmatpush1.msra.mxu0 %v30
  %64 = vmatprep.subr.mxu0 0.0
  %65 = vmatpush1.msra.mxu0 %v31
  %66 = vmatprep.subr.mxu0 0.0
  %67 = vmatpush1.msra.mxu0 %v32
  %68 = vmatprep.subr.mxu0 0.0
  %69 = vmatpush1.msra.mxu0 %v33
  %70 = vmatprep.subr.mxu0 0.0
  %71 = vmatpush1.msra.mxu0 %v34
  %72 = vmatprep.subr.mxu0 0.0
  %73 = vmatpush1.msra.mxu0 %v35
  %74 = vmatprep.subr.mxu0 0.0
  %75 = vmatpush1.msra.mxu0 %v36
  %76 = vmatprep.subr.mxu0 0.0
  %77 = vmatpush1.msra.mxu0 0.0
  %78 = vmatprep.subr.mxu0 0.0
  %79 = vmatpush1.msra.mxu0 0.0
  %80 = vmatprep.subr.mxu0 0.0
  %81 = vmatpush1.msra.mxu0 0.0
  %82 = vmatprep.subr.mxu0 0.0
  %83 = vmatpush1.msra.mxu0 0.0
  %84 = vmatprep.subr.mxu0 0.0
  %85 = vmatpush1.msra.mxu0 0.0
  %86 = vmatprep.subr.mxu0 0.0
  %87 = vmatpush1.msra.mxu0 0.0
  %88 = vmatprep.subr.mxu0 0.0
  %89 = vmatpush1.msra.mxu0 0.0
  %90 = vmatprep.subr.mxu0 0.0
  %91 = vmatpush1.msra.mxu0 0.0
  %92 = vmatprep.subr.mxu0 0.0
  %93 = vmatpush1.msra.mxu0 0.0
  %94 = vmatprep.subr.mxu0 0.0
  %95 = vmatpush1.msra.mxu0 0.0
  %96 = vmatprep.subr.mxu0 0.0
  %97 = vmatpush1.msra.mxu0 0.0
  %98 = vmatprep.subr.mxu0 0.0
  %99 = vmatpush1.msra.mxu0 0.0
  %100 = vmatprep.subr.mxu0 0.0
  %101 = vmatpush1.msra.mxu0 0.0
  %102 = vmatprep.subr.mxu0 0.0
  %103 = vmatpush1.msra.mxu0 0.0
  %104 = vmatprep.subr.mxu0 0.0
  %105 = vmatpush1.msra.mxu0 0.0
  %106 = vmatprep.subr.mxu0 0.0
  %107 = vmatpush1.msra.mxu0 0.0
  %108 = vmatprep.mubr.f32.mxu0 0.0
  %109 = vmatmul.mubr.f32.gmra.mrb[0].mxu0 %v20
  %v110 = vpop.f32.mrb[0].mxu0
  %v111 = vadd.f32 %v42, %v110
  %v112 = vpop.f32.mrb[0].mxu0
  %113 = vdwg.mxu0
  %v114 = vlaneseq
  %v115 = vshrl.u32 %v114, 7
  %vm116 = vcmp.lt.s32.totalorder %v115, 2
  %v117 = vsel %vm116, %v111, 0.0
  %v118 = vrot.slane %v117, 4
  %v119 = vadd.f32 %v117, %v118
  %v120 = vrot.slane %v119, 2
  %v121 = vadd.f32 %v119, %v120
  %v122 = vrot.slane %v121, 1
  %v123 = vadd.f32 %v121, %v122
  %v124 = vmul.f32 %v123, 0.5
  %v125 = vsub.f32 %v111, %v124
  %v126 = vsel %vm116, %v125, 0.0
  %v127 = vmul.f32 %v126, %v126
  %v128 = vrot.slane %v127, 4
  %v129 = vadd.f32 %v127, %v128
  %v130 = vrot.slane %v129, 2
  %v131 = vadd.f32 %v129, %v130
  %v132 = vrot.slane %v131, 1
  %v133 = vadd.f32 %v131, %v132
  %v134 = vmul.f32 %v133, 0.5
  %v135 = vld [vmem:[%s3] sm:$0x1]
  %v136 = vadd.f32 %v134, 1e-05
  %v137 = vrsqrt.pop %v136
  %v138 = vmul.f32 %v135, %v137
  %v139 = vld [vmem:[%s4] sm:$0x1]
  %v140 = vmul.f32 %v124, %v138
  %v141 = vsub.f32 %v139, %v140
  %v143 = vlaneseq
  %v144 = vshrl.u32 %v143, 7
  %v145 = vsub.s32 0, %v144
  %v146 = vrot.slane %v138, %v145
  %v148 = vmul.f32 %v111, %v146
  %v150 = vlaneseq
  %v151 = vshrl.u32 %v150, 7
  %v152 = vsub.s32 0, %v151
  %v153 = vrot.slane %v141, %v152
  %v155 = vadd.f32 %v148, %v153
  %v156 = vmax.f32 %v155, 0.0
  %157 = vst [vmem:[%s5] sm:$0xff] %v156
  // Predicated region
  $region22: #{path_encoder_forward.1} parent=0 // pred_check
    _
  $region23: #{path_encoder_forward.1} parent=0 // pred_check_branch
    %159 = sbr.rel (0) target = $region25
  $region24: #{path_encoder_forward.1} parent=0 // pred_region
    _
  $region25: #{path_encoder_forward.1} parent=0 // pred_fallthru
    _
  // Predicated region
  $region26: #{path_encoder_forward.1} parent=0 // pred_check
    _
  $region27: #{path_encoder_forward.1} parent=0 // pred_check_branch
    %161 = sbr.rel (0) target = $region29
  $region28: #{path_encoder_forward.1} parent=0 // pred_region
    _
  $region29: #{path_encoder_forward.1} parent=0 // pred_fallthru
    _

</llo_original>
